<compile_context>
chip_gen: v5e
topology: v5e:2x2
jax: 0.10.0
libtpu: 0.0.40
codegen_flags: <defaults>
</compile_context>

<pallas_src>
import functools

import jax
import jax.numpy as jnp
from jax.experimental import pallas as pl
from jax.experimental.pallas import tpu as pltpu

LRELU_SLOPE = 0.1


def get_padding(kernel_size, dilation=1):
    return int((kernel_size * dilation - dilation) / 2)


def _cdiv(a, b):
    return -(-a // b)


def _round_up(x, m):
    return ((x + m - 1) // m) * m


@functools.lru_cache(maxsize=None)
def _vmem_capacity_bytes():
    try:
        cap = getattr(pltpu.get_tpu_info(), "vmem_capacity_bytes", None)
        if cap:
            return int(cap)
    except Exception:
        pass
    return 64 * 1024 * 1024          # conservative (v7x-sized) fallback


def _pick_tile(Cin, Cout, K, in_b, out_b, n_res, out_len, tl_max):
    """Largest lane-dense time tile that fits a VMEM budget (double-buffered
    blocks + in-kernel temporaries), plus a matching vmem_limit_bytes."""
    cap = _vmem_capacity_bytes()
    budget = int(cap * 0.4)
    col = (2 * Cin * in_b            # main input block, double buffered
           + Cin * in_b              # masked window copy
           + 2 * Cin                 # bf16 window
           + 2 * K * Cin             # bf16 tap stack
           + 4 * Cout                # f32 accumulator
           + 2 * Cout * out_b        # output block, double buffered
           + n_res * Cout * (2 * in_b + 4))
    fixed = (2 * Cout * K * Cin * 2          # bf16 weights, double buffered
             + 4 * Cin * 128 * in_b          # two halo blocks, double buffered
             + (1 << 20))                    # slack
    fit = max(0, budget - fixed) // max(col, 1) // 128 * 128
    TL = max(128, min(tl_max, max(fit, 128), _round_up(out_len, 128)))
    est = fixed + col * TL
    vmem_limit = int(min(cap * 0.9, max(2 * est, 32 * 1024 * 1024)))
    return TL, vmem_limit


# --------------------------------------------------------------------------
# Pallas kernel: tiled dilated 1-D conv as one fused MXU contraction per tile
# --------------------------------------------------------------------------
def _conv1d_kernel(x_ref, lh_ref, rh_ref, w_ref, b_ref, *rest,
                   K, dilation, pre_slope, PL, PR, L_in, n_res):
    res_refs = rest[:n_res]
    o_ref = rest[n_res]
    TL = o_ref.shape[2]
    t = pl.program_id(0)

    # window covering x positions [t*TL - PL, t*TL + TL + PR)
    parts = []
    if PL > 0:
        parts.append(lh_ref[0][:, 128 - PL:])
    parts.append(x_ref[0])
    if PR > 0:
        parts.append(rh_ref[0][:, :PR])
    xc = parts[0] if len(parts) == 1 else jnp.concatenate(parts, axis=-1)

    width = PL + TL + PR
    pos = t * TL - PL + jax.lax.broadcasted_iota(jnp.int32, (1, width), 1)
    xc = jnp.where((pos >= 0) & (pos < L_in), xc, 0)   # zero pad + tail mask
    if pre_slope is not None:                          # fused leaky_relu
        xc = jnp.where(xc >= 0, xc, pre_slope * xc)
    xc = xc.astype(jnp.bfloat16)                       # cast once, then stack

    if K > 1:
        xs = jnp.concatenate(
            [xc[:, k * dilation:k * dilation + TL] for k in range(K)], axis=0)
    else:
        xs = xc[:, :TL]

    acc = jnp.dot(w_ref[...], xs, preferred_element_type=jnp.float32)
    acc = acc + b_ref[...]
    for r_ref in res_refs:                             # fused residual adds
        acc = acc + r_ref[0].astype(jnp.float32)
    o_ref[0] = acc.astype(o_ref.dtype)


def conv1d(x, w_flat, b_col, *, K, dilation=1, pad_left=0, out_len,
           pre_slope=None, residuals=(), out_dtype=jnp.bfloat16, tl_max=2048):
    """out[:, oc, q] = b[oc] + sum_{k,c} w_flat[oc, k*Cin+c] *
         leaky(xpad)[:, c, q + k*dilation]   (+ sum of residuals),
       where xpad = x zero-padded by `pad_left` on the left (zeros elsewhere).
       Padding / halos are handled inside the kernel (no wrapper-side pad)."""
    B, Cin, L = x.shape
    Cout = w_flat.shape[0]
    assert w_flat.shape[1] == K * Cin

    H = (K - 1) * dilation
    PL = pad_left
    PR = H - PL
    assert 0 <= PL <= 128 and 0 <= PR <= 128
    n_res = len(residuals)

    in_b = jnp.dtype(x.dtype).itemsize
    out_b = jnp.dtype(out_dtype).itemsize
    TL, vmem_limit = _pick_tile(Cin, Cout, K, in_b, out_b, n_res, out_len,
                                tl_max)
    nT = _cdiv(out_len, TL)
    assert nT <= _cdiv(L, TL), (out_len, L, TL)

    TLB = TL // 128
    n128 = _cdiv(L, 128)

    kern = functools.partial(_conv1d_kernel, K=K, dilation=dilation,
                             pre_slope=pre_slope, PL=PL, PR=PR, L_in=L,
                             n_res=n_res)
    flops = 2 * B * Cout * K * Cin * out_len
    bytes_accessed = (B * Cin * (L + 2 * nT * 128) * in_b
                      + B * Cout * out_len * (out_b + n_res * in_b)
                      + 2 * Cout * K * Cin + 4 * Cout)

    return pl.pallas_call(
        kern,
        out_shape=jax.ShapeDtypeStruct((B, Cout, out_len), out_dtype),
        grid=(nT, B),
        in_specs=[
            pl.BlockSpec((1, Cin, TL), lambda t, b: (b, 0, t)),
            pl.BlockSpec((1, Cin, 128),
                         lambda t, b: (b, 0, jnp.maximum(t * TLB - 1, 0))),
            pl.BlockSpec((1, Cin, 128),
                         lambda t, b: (b, 0,
                                       jnp.minimum((t + 1) * TLB, n128 - 1))),
            pl.BlockSpec((Cout, K * Cin), lambda t, b: (0, 0)),
            pl.BlockSpec((Cout, 1), lambda t, b: (0, 0)),
        ] + [pl.BlockSpec((1, Cout, TL), lambda t, b: (b, 0, t))
             for _ in range(n_res)],
        out_specs=pl.BlockSpec((1, Cout, TL), lambda t, b: (b, 0, t)),
        compiler_params=pltpu.CompilerParams(
            dimension_semantics=("parallel", "parallel"),
            vmem_limit_bytes=vmem_limit),
        cost_estimate=pl.CostEstimate(flops=flops, transcendentals=0,
                                      bytes_accessed=bytes_accessed),
    )(x, x, x, w_flat, b_col, *residuals)


# --------------------------------------------------------------------------
# Polyphase transposed conv (no zero-stuffing)
# --------------------------------------------------------------------------
def _polyphase_meta(K, stride, padding):
    """Static polyphase decomposition of ConvTranspose1d(K, stride, padding)."""
    s = stride
    rho = [(r + padding) % s for r in range(s)]
    delta = [(r + padding) // s for r in range(s)]
    Kr = [_cdiv(K - rho[r], s) for r in range(s)]
    pad_left = max(0, max(Kr[r] - 1 - delta[r] for r in range(s)))
    T = max(pad_left + delta[r] for r in range(s)) + 1
    taps = []
    for r in range(s):
        tr = []
        for t in range(T):
            tt = pad_left + delta[r] - t
            if 0 <= tt <= Kr[r] - 1:
                tr.append((t, rho[r] + tt * s))
        taps.append(tr)
    return T, pad_left, taps


def conv_transpose1d_poly(x, wp_flat, bp_col, *, stride, K, padding, pre_slope,
                          out_dtype=jnp.bfloat16, tl_max=2048):
    B, Cin, L = x.shape
    T, pad_left, _ = _polyphase_meta(K, stride, padding)
    out_total = (L - 1) * stride + K - 2 * padding
    Lq = _cdiv(out_total, stride)
    Cout = wp_flat.shape[0] // stride
    z = conv1d(x, wp_flat, bp_col, K=T, dilation=1, pad_left=pad_left,
               out_len=Lq, pre_slope=pre_slope, out_dtype=out_dtype,
               tl_max=tl_max)                          # (B, stride*Cout, Lq)
    # TODO(synk): interleave phases in the conv-kernel epilogue to avoid this
    # (bf16) relayout; kept in the wrapper since in-kernel minor-axis
    # transposes are a lowering risk.
    y = z.reshape(B, stride, Cout, Lq).transpose(0, 2, 3, 1)
    y = y.reshape(B, Cout, Lq * stride)
    return y[:, :, :out_total]


# --------------------------------------------------------------------------
# ResBlocks (residual / accumulator adds fused into the conv epilogue)
# --------------------------------------------------------------------------
def resblock1_forward(x, p, ksize, dils, extra=None):
    h = x
    last = len(dils) - 1
    for j, d in enumerate(dils):
        t = conv1d(h, p["c1"][j]["w"], p["c1"][j]["b"], K=ksize, dilation=d,
                   pad_left=get_padding(ksize, d), out_len=h.shape[-1],
                   pre_slope=LRELU_SLOPE)
        res = (h,) if (j < last or extra is None) else (h, extra)
        h = conv1d(t, p["c2"][j]["w"], p["c2"][j]["b"], K=ksize, dilation=1,
                   pad_left=get_padding(ksize, 1), out_len=t.shape[-1],
                   pre_slope=LRELU_SLOPE, residuals=res)
    return h


def resblock2_forward(x, p, ksize, dils, extra=None):
    h = x
    last = len(dils) - 1
    for j, d in enumerate(dils):
        res = (h,) if (j < last or extra is None) else (h, extra)
        h = conv1d(h, p["c"][j]["w"], p["c"][j]["b"], K=ksize, dilation=d,
                   pad_left=get_padding(ksize, d), out_len=h.shape[-1],
                   pre_slope=LRELU_SLOPE, residuals=res)
    return h


# --------------------------------------------------------------------------
# iSTFT: fused exp/sin/cos + single windowed inverse-rDFT matmul per tile
# --------------------------------------------------------------------------
def hann_window(n):
    # periodic Hann (scipy get_window('hann', n, fftbins=True))
    return (0.5 - 0.5 * jnp.cos(2.0 * jnp.pi * jnp.arange(n) / n)).astype(
        jnp.float32)


def _istft_frame_kernel(s_ref, p_ref, basis_ref, o_ref):
    spec = jnp.exp(s_ref[0])                    # (F, TT)
    ph = jnp.sin(p_ref[0])
    stacked = jnp.concatenate([spec * jnp.cos(ph), spec * jnp.sin(ph)], axis=0)
    o_ref[0] = jnp.dot(basis_ref[...], stacked,
                       preferred_element_type=jnp.float32)


def istft_frames(spec_raw, phase_raw, basis, n_fft):
    B, F, T = spec_raw.shape
    TT = min(2048, _round_up(T, 128))
    nT = _cdiv(T, TT)
    flops = 4 * B * n_fft * F * T
    trans = 4 * B * F * T
    bytes_accessed = 4 * (2 * B * F * T + B * n_fft * T + 2 * n_fft * F)
    return pl.pallas_call(
        _istft_frame_kernel,
        out_shape=jax.ShapeDtypeStruct((B, n_fft, T), jnp.float32),
        grid=(nT, B),
        in_specs=[
            pl.BlockSpec((1, F, TT), lambda t, b: (b, 0, t)),
            pl.BlockSpec((1, F, TT), lambda t, b: (b, 0, t)),
            pl.BlockSpec((n_fft, 2 * F), lambda t, b: (0, 0)),
        ],
        out_specs=pl.BlockSpec((1, n_fft, TT), lambda t, b: (b, 0, t)),
        compiler_params=pltpu.CompilerParams(
            dimension_semantics=("parallel", "parallel")),
        cost_estimate=pl.CostEstimate(flops=flops, transcendentals=trans,
                                      bytes_accessed=bytes_accessed),
    )(spec_raw, phase_raw, basis["b"])


def torch_stft_inverse(x_post, istft_params, n_fft, hop):
    """Mirrors torch.istft(spec*exp(1j*phase), n_fft, hop, n_fft, hann,
    center=True).unsqueeze(-2) where spec=exp(x[:F]), phase=sin(x[F:])."""
    F = n_fft // 2 + 1
    spec_raw = x_post[:, :F, :]
    phase_raw = x_post[:, F:, :]
    frames = istft_frames(spec_raw, phase_raw, istft_params, n_fft)  # (B,N,T)
    B, _, T = frames.shape
    win = istft_params["win"]
    total = n_fft + hop * (T - 1)
    half = n_fft // 2

    if n_fft % hop == 0:
        # vectorized overlap-add with the frame axis kept lane-dense
        ratio = n_fft // hop
        nblk = T + ratio - 1
        fr = frames.reshape(B, ratio, hop, T)
        w2 = (win * win).reshape(ratio, hop)
        sig = jnp.zeros((B, hop, nblk), jnp.float32)
        env = jnp.zeros((hop, nblk), jnp.float32)
        for r in range(ratio):
            sig = sig + jnp.pad(fr[:, r], ((0, 0), (0, 0),
                                           (r, ratio - 1 - r)))
            env = env + jnp.pad(jnp.broadcast_to(w2[r][:, None], (hop, T)),
                                ((0, 0), (r, ratio - 1 - r)))
        sig = sig.transpose(0, 2, 1).reshape(B, nblk * hop)
        env = env.transpose(1, 0).reshape(nblk * hop)
    else:
        # TODO(synk): rare non-divisible hop config -> sequential overlap-add.
        w2 = win * win
        sig = jnp.zeros((B, total), jnp.float32)
        env = jnp.zeros((total,), jnp.float32)
        for t in range(T):
            s = t * hop
            sig = sig.at[:, s:s + n_fft].add(frames[:, :, t])
            env = env.at[s:s + n_fft].add(w2)

    sig = sig[:, half:total - half]
    env = env[half:total - half]
    sig = sig / jnp.maximum(env, 1e-11)
    return sig[:, None, :]                      # .unsqueeze(-2)


# --------------------------------------------------------------------------
# Parameter preparation (one-time, outside jit)
# --------------------------------------------------------------------------
def _prep_conv(w, b, scale=1.0):
    Cout, Cin, K = w.shape
    wf = jnp.transpose(w.astype(jnp.float32) * scale, (0, 2, 1))
    wf = wf.reshape(Cout, K * Cin).astype(jnp.bfloat16)
    return dict(w=wf, b=b.reshape(Cout, 1).astype(jnp.float32))


def _prep_conv_transpose(w, b, *, stride, padding, scale=1.0):
    Cin, Cout, K = w.shape
    T, _, taps = _polyphase_meta(K, stride, padding)
    wf32 = w.astype(jnp.float32) * scale
    Wp = jnp.zeros((stride, Cout, Cin, T), jnp.float32)
    for r in range(stride):
        for (t, j) in taps[r]:
            Wp = Wp.at[r, :, :, t].set(jnp.transpose(wf32[:, :, j]))
    wf = jnp.transpose(Wp.reshape(stride * Cout, Cin, T), (0, 2, 1))
    wf = wf.reshape(stride * Cout, T * Cin).astype(jnp.bfloat16)
    bp = jnp.tile(b.astype(jnp.float32), stride).reshape(stride * Cout, 1)
    return dict(w=wf, b=bp)


def _prep_istft(n_fft):
    F = n_fft // 2 + 1
    n = jnp.arange(n_fft, dtype=jnp.float32)[:, None]
    k = jnp.arange(F, dtype=jnp.float32)[None, :]
    ang = 2.0 * jnp.pi * n * k / n_fft
    wgt = jnp.where((jnp.arange(F) == 0) | (jnp.arange(F) == n_fft // 2),
                    1.0, 2.0).astype(jnp.float32)
    win = hann_window(n_fft)
    cw = jnp.cos(ang) * wgt[None, :] / n_fft * win[:, None]
    sw = jnp.sin(ang) * wgt[None, :] / n_fft * win[:, None]
    basis = jnp.concatenate([cw, -sw], axis=1).astype(jnp.float32)  # (N, 2F)
    return dict(b=basis, win=win)


def prepare_generator_params(params, cfg):
    num_kernels = len(cfg["resblock_kernel_sizes"])
    inv_nk = 1.0 / num_kernels
    pp = {"conv_pre": _prep_conv(params["conv_pre"]["w"],
                                 params["conv_pre"]["b"])}
    ups = []
    for i, (u, k) in enumerate(zip(cfg["upsample_rates"],
                                   cfg["upsample_kernel_sizes"])):
        scale = inv_nk if i > 0 else 1.0   # fold /num_kernels of prev group
        ups.append(_prep_conv_transpose(params["ups"][i]["w"],
                                        params["ups"][i]["b"],
                                        stride=u, padding=(k - u) // 2,
                                        scale=scale))
    pp["ups"] = ups

    rbs = []
    for rp in params["resblocks"]:
        if cfg["resblock"] == "1":
            rbs.append(dict(
                c1=[_prep_conv(w, b) for w, b in zip(rp["w1"], rp["b1"])],
                c2=[_prep_conv(w, b) for w, b in zip(rp["w2"], rp["b2"])]))
        else:
            rbs.append(dict(
                c=[_prep_conv(w, b) for w, b in zip(rp["w"], rp["b"])]))
    pp["resblocks"] = rbs

    pp["conv_post"] = _prep_conv(params["conv_post"]["w"],
                                 params["conv_post"]["b"], scale=inv_nk)
    pp["istft"] = _prep_istft(cfg["gen_istft_n_fft"])
    return pp


# --------------------------------------------------------------------------
# Generator
# --------------------------------------------------------------------------
def init_generator_params(key, cfg):
    cnt = [0]

    def nk():
        cnt[0] += 1
        return jax.random.fold_in(key, cnt[0])

    def w_init(shape):  # init_weights: normal(mean=0, std=0.01)
        return (0.01 * jax.random.normal(nk(), shape)).astype(jnp.float32)

    uic = cfg["upsample_initial_channel"]
    params = {}
    params["conv_pre"] = dict(
        w=w_init((uic, cfg["input_channels"], cfg["conv_pre_kernel_size"])),
        b=w_init((uic,)))
    ups = []
    for i, (u, k) in enumerate(zip(cfg["upsample_rates"],
                                   cfg["upsample_kernel_sizes"])):
        dec = 1 if u != 1 else 0
        cin = uic // 2 ** i
        cout = uic // 2 ** (i + dec)
        ups.append(dict(w=w_init((cin, cout, k)), b=w_init((cout,))))
    params["ups"] = ups

    resblocks = []
    ch = uic
    for i in range(len(cfg["upsample_rates"])):
        dec = 1 if cfg["upsample_rates"][i] != 1 else 0
        ch = uic // 2 ** (i + dec)
        for (k, d) in zip(cfg["resblock_kernel_sizes"],
                          cfg["resblock_dilation_sizes"]):
            if cfg["resblock"] == "1":
                resblocks.append(dict(
                    w1=[w_init((ch, ch, k)) for _ in d],
                    b1=[w_init((ch,)) for _ in d],
                    w2=[w_init((ch, ch, k)) for _ in d],
                    b2=[w_init((ch,)) for _ in d]))
            else:
                resblocks.append(dict(
                    w=[w_init((ch, ch, k)) for _ in d],
                    b=[w_init((ch,)) for _ in d]))
    params["resblocks"] = resblocks

    n_fft = cfg["gen_istft_n_fft"]
    params["conv_post"] = dict(w=w_init((n_fft + 2, ch, 7)),
                               b=w_init((n_fft + 2,)))
    return params


def generator_forward(pp, x, cfg):
    num_kernels = len(cfg["resblock_kernel_sizes"])
    rb_fn = resblock1_forward if cfg["resblock"] == "1" else resblock2_forward

    kpre = cfg["conv_pre_kernel_size"]
    L = x.shape[-1]
    x = conv1d(x, pp["conv_pre"]["w"], pp["conv_pre"]["b"], K=kpre,
               pad_left=kpre // 2, out_len=L + 2 * (kpre // 2) - (kpre - 1))

    for i, (u, k) in enumerate(zip(cfg["upsample_rates"],
                                   cfg["upsample_kernel_sizes"])):
        # leaky_relu(0.1) fused as pre_slope; polyphase transposed conv
        x = conv_transpose1d_poly(x, pp["ups"][i]["w"], pp["ups"][i]["b"],
                                  stride=u, K=k, padding=(k - u) // 2,
                                  pre_slope=LRELU_SLOPE)
        xs = None
        for j, (rk, rd) in enumerate(zip(cfg["resblock_kernel_sizes"],
                                         cfg["resblock_dilation_sizes"])):
            xs = rb_fn(x, pp["resblocks"][i * num_kernels + j], rk, rd,
                       extra=xs)
        x = xs
        # the /num_kernels scale is folded into the next layer's weights.

    # F.leaky_relu (slope 0.01) commutes with ReflectionPad1d((1, 0)) and with
    # zero padding, so it is fused into conv_post as pre_slope=0.01.
    x = jnp.concatenate([x[:, :, 1:2], x], axis=-1)
    L2 = x.shape[-1]
    x = conv1d(x, pp["conv_post"]["w"], pp["conv_post"]["b"], K=7, pad_left=3,
               out_len=L2, pre_slope=0.01, out_dtype=jnp.float32)

    return torch_stft_inverse(x, pp["istft"], cfg["gen_istft_n_fft"],
                              cfg["gen_istft_hop_size"])


# --------------------------------------------------------------------------
# Pure-JAX float32 reference (lax conv / irfft), used only for validation
# --------------------------------------------------------------------------
_HI = jax.lax.Precision.HIGHEST


def _ref_leaky(x, s=LRELU_SLOPE):
    return jnp.where(x >= 0, x, s * x)


def _ref_conv1d(x, w, b, dilation=1, padding=0):
    y = jax.lax.conv_general_dilated(
        x, w, window_strides=(1,), padding=[(padding, padding)],
        rhs_dilation=(dilation,), dimension_numbers=('NCH', 'OIH', 'NCH'),
        precision=_HI)
    return y + b[None, :, None]


def _ref_conv_transpose1d(x, w, b, stride, padding):
    K = w.shape[-1]
    wT = jnp.flip(jnp.transpose(w, (1, 0, 2)), -1)      # (Cout, Cin, K)
    y = jax.lax.conv_general_dilated(
        x, wT, window_strides=(1,),
        padding=[(K - 1 - padding, K - 1 - padding)],
        lhs_dilation=(stride,), dimension_numbers=('NCH', 'OIH', 'NCH'),
        precision=_HI)
    return y + b[None, :, None]


def _ref_resblock1(x, rp, k, dils):
    for w1, b1, w2, b2, d in zip(rp["w1"], rp["b1"], rp["w2"], rp["b2"], dils):
        xt = _ref_conv1d(_ref_leaky(x), w1, b1, d, get_padding(k, d))
        xt = _ref_conv1d(_ref_leaky(xt), w2, b2, 1, get_padding(k, 1))
        x = xt + x
    return x


def _ref_resblock2(x, rp, k, dils):
    for w, b, d in zip(rp["w"], rp["b"], dils):
        x = _ref_conv1d(_ref_leaky(x), w, b, d, get_padding(k, d)) + x
    return x


def _ref_istft(spec, phase, n_fft, hop):
    X = spec * (jnp.cos(phase) + 1j * jnp.sin(phase))
    frames = jnp.fft.irfft(X, n=n_fft, axis=1)            # (B, n_fft, T)
    win = hann_window(n_fft)
    frames = frames * win[None, :, None]
    B, _, T = frames.shape
    total = n_fft + hop * (T - 1)
    sig = jnp.zeros((B, total), jnp.float32)
    env = jnp.zeros((total,), jnp.float32)
    w2 = win * win
    for t in range(T):
        sig = sig.at[:, t * hop:t * hop + n_fft].add(frames[:, :, t])
        env = env.at[t * hop:t * hop + n_fft].add(w2)
    half = n_fft // 2
    sig = sig[:, half:total - half] / jnp.maximum(env[half:total - half],
                                                  1e-11)
    return sig[:, None, :]


def reference_forward(params, x, cfg):
    nk_ = len(cfg["resblock_kernel_sizes"])
    kpre = cfg["conv_pre_kernel_size"]
    x = _ref_conv1d(x, params["conv_pre"]["w"], params["conv_pre"]["b"], 1,
                    kpre // 2)
    for i, (u, k) in enumerate(zip(cfg["upsample_rates"],
                                   cfg["upsample_kernel_sizes"])):
        x = _ref_leaky(x)
        x = _ref_conv_transpose1d(x, params["ups"][i]["w"],
                                  params["ups"][i]["b"], u, (k - u) // 2)
        xs = None
        for j, (rk, rd) in enumerate(zip(cfg["resblock_kernel_sizes"],
                                         cfg["resblock_dilation_sizes"])):
            rp = params["resblocks"][i * nk_ + j]
            r = (_ref_resblock1(x, rp, rk, rd) if cfg["resblock"] == "1"
                 else _ref_resblock2(x, rp, rk, rd))
            xs = r if xs is None else xs + r
        x = xs / nk_
    x = _ref_leaky(x, 0.01)
    x = jnp.concatenate([x[:, :, 1:2], x], axis=-1)
    x = _ref_conv1d(x, params["conv_post"]["w"], params["conv_post"]["b"],
                    1, 3)
    F = cfg["gen_istft_n_fft"] // 2 + 1
    return _ref_istft(jnp.exp(x[:, :F, :]), jnp.sin(x[:, F:, :]),
                      cfg["gen_istft_n_fft"], cfg["gen_istft_hop_size"])


if __name__ == "__main__":
    key = jax.random.PRNGKey(0)
    k1, k2, k3, k4, k5 = jax.random.split(key, 5)

    def q(a):  # bf16-representable f32 (so kernel vs lax reference is exact)
        return a.astype(jnp.bfloat16).astype(jnp.float32)

    # ---- unit test 1: dilated conv kernel (multi-tile, halos, masking) ----
    Cin_u, Cout_u, Lu, Ku, du = 24, 40, 300, 3, 5
    xu = q(jax.random.normal(k1, (2, Cin_u, Lu), jnp.float32))
    wu = q(0.1 * jax.random.normal(k2, (Cout_u, Cin_u, Ku), jnp.float32))
    bu = 0.1 * jax.random.normal(k3, (Cout_u,), jnp.float32)
    ru = q(jax.random.normal(k4, (2, Cout_u, Lu), jnp.float32))
    pu = get_padding(Ku, du)
    pc = _prep_conv(wu, bu)
    got = conv1d(xu, pc["w"], pc["b"], K=Ku, dilation=du, pad_left=pu,
                 out_len=Lu, residuals=(ru,), out_dtype=jnp.float32,
                 tl_max=128)
    want = _ref_conv1d(xu, wu, bu, du, pu) + ru
    e1 = float(jnp.max(jnp.abs(got - want)))
    assert e1 <= 1e-4 * float(jnp.max(jnp.abs(want))) + 1e-5, e1

    # ---- unit test 2: polyphase transposed conv vs lax ----
    Ct_i, Ct_o, Lt, kt, st = 16, 8, 200, 4, 2
    xt = q(jax.random.normal(k5, (2, Ct_i, Lt), jnp.float32))
    wt = q(0.1 * jax.random.normal(k2, (Ct_i, Ct_o, kt), jnp.float32))
    bt = 0.1 * jax.random.normal(k3, (Ct_o,), jnp.float32)
    pt = (kt - st) // 2
    pct = _prep_conv_transpose(wt, bt, stride=st, padding=pt)
    got_t = conv_transpose1d_poly(xt, pct["w"], pct["b"], stride=st, K=kt,
                                  padding=pt, pre_slope=None,
                                  out_dtype=jnp.float32, tl_max=128)
    want_t = _ref_conv_transpose1d(xt, wt, bt, st, pt)
    e2 = float(jnp.max(jnp.abs(got_t - want_t)))
    assert e2 <= 1e-4 * float(jnp.max(jnp.abs(want_t))) + 1e-5, e2

    # ---- full generator ----
    cfg = dict(
        resblock="1",
        upsample_rates=(2, 2),
        upsample_kernel_sizes=(4, 4),
        upsample_initial_channel=32,
        resblock_kernel_sizes=(3,),
        resblock_dilation_sizes=((1, 3, 5),),
        conv_pre_kernel_size=7,
        input_channels=8,
        gen_istft_n_fft=16,
        gen_istft_hop_size=4,
    )
    params = init_generator_params(jax.random.fold_in(key, 123), cfg)
    prepped = prepare_generator_params(params, cfg)

    B, Cin, L = 2, cfg["input_channels"], 8
    x = jax.random.normal(key, (B, Cin, L), jnp.float32)

    fwd = jax.jit(functools.partial(generator_forward, cfg=cfg))
    out = fwd(prepped, x)
    jax.block_until_ready(out)

    # conv_pre keeps L=8; two 2x upsamples -> 32; reflection pad -> 33 frames;
    # istft (center=True): (33-1)*hop = 128 samples; unsqueeze(-2) -> (B,1,128)
    expected = (B, 1, (L * 4 + 1 - 1) * cfg["gen_istft_hop_size"])
    assert out.shape == expected, (out.shape, expected)
    assert bool(jnp.all(jnp.isfinite(out)))

    # numeric check against a float32 lax/irfft reference (bf16-tolerant)
    ref = reference_forward(params, x, cfg)
    denom = float(jnp.max(jnp.abs(ref)))
    err = float(jnp.max(jnp.abs(out - ref)))
    assert err <= 5e-2 * denom + 2e-3, (err, denom)

    print("KERNEL_OK")
</pallas_src>

<mosaic_0001>
module attributes {stable_mosaic.version = 11 : i64} {
  func.func @_conv1d_kernel(%arg0: i32, %arg1: i32, %arg2: memref<1x24x128xf32, #tpu.memory_space<vmem>>, %arg3: memref<1x24x128xf32, #tpu.memory_space<vmem>>, %arg4: memref<1x24x128xf32, #tpu.memory_space<vmem>>, %arg5: memref<40x72xbf16, #tpu.memory_space<vmem>>, %arg6: memref<40x1xf32, #tpu.memory_space<vmem>>, %arg7: memref<1x40x128xf32, #tpu.memory_space<vmem>>, %arg8: memref<1x40x128xf32, #tpu.memory_space<vmem>>) attributes {dimension_semantics = [#tpu.dimension_semantics<parallel>, #tpu.dimension_semantics<parallel>], iteration_bounds = array<i64: 3, 2>, scalar_prefetch = 0 : i64, scratch_operands = 0 : i64, tpu.core_type = #tpu.core_type<tc>, window_params = [{transform_indices = @transform_0, window_bounds = array<i64: 1, 24, 128>}, {transform_indices = @transform_1, window_bounds = array<i64: 1, 24, 128>}, {transform_indices = @transform_2, window_bounds = array<i64: 1, 24, 128>}, {pipeline_mode = #tpu.pipeline_mode<synchronous>, transform_indices = @transform_3, window_bounds = array<i64: 40, 72>}, {pipeline_mode = #tpu.pipeline_mode<synchronous>, transform_indices = @transform_4, window_bounds = array<i64: 40, 1>}, {transform_indices = @transform_5, window_bounds = array<i64: 1, 40, 128>}, {transform_indices = @transform_6, window_bounds = array<i64: 1, 40, 128>}]} {
    %c0 = arith.constant 0 : index
    %c0_0 = arith.constant 0 : index
    %c0_1 = arith.constant 0 : index
    %0 = vector.load %arg3[%c0, %c0_0, %c0_1] : memref<1x24x128xf32, #tpu.memory_space<vmem>>, vector<1x24x128xf32>
    %1 = vector.shape_cast %0 : vector<1x24x128xf32> to vector<24x128xf32>
    %2 = vector.extract_strided_slice %1 {offsets = [0, 123], sizes = [24, 5], strides = [1, 1]} : vector<24x128xf32> to vector<24x5xf32>
    %c0_2 = arith.constant 0 : index
    %c0_3 = arith.constant 0 : index
    %c0_4 = arith.constant 0 : index
    %3 = vector.load %arg2[%c0_2, %c0_3, %c0_4] : memref<1x24x128xf32, #tpu.memory_space<vmem>>, vector<1x24x128xf32>
    %4 = vector.shape_cast %3 : vector<1x24x128xf32> to vector<24x128xf32>
    %c0_5 = arith.constant 0 : index
    %c0_6 = arith.constant 0 : index
    %c0_7 = arith.constant 0 : index
    %5 = vector.load %arg4[%c0_5, %c0_6, %c0_7] : memref<1x24x128xf32, #tpu.memory_space<vmem>>, vector<1x24x128xf32>
    %6 = vector.shape_cast %5 : vector<1x24x128xf32> to vector<24x128xf32>
    %7 = vector.extract_strided_slice %6 {offsets = [0, 0], sizes = [24, 5], strides = [1, 1]} : vector<24x128xf32> to vector<24x5xf32>
    %8 = tpu.concatenate %2, %4, %7 in 1 : vector<24x5xf32>, vector<24x128xf32>, vector<24x5xf32> -> vector<24x138xf32>
    %c128_i32 = arith.constant 128 : i32
    %9 = arith.muli %arg0, %c128_i32 : i32
    %c5_i32 = arith.constant 5 : i32
    %10 = arith.subi %9, %c5_i32 : i32
    %11 = tpu.iota {dimensions = array<i32: 1>} : vector<1x138xi32>
    %12 = vector.broadcast %10 : i32 to vector<1x138xi32>
    %13 = arith.addi %12, %11 : vector<1x138xi32>
    %c0_i32 = arith.constant 0 : i32
    %14 = vector.broadcast %c0_i32 : i32 to vector<1x138xi32>
    %15 = arith.cmpi sge, %13, %14 : vector<1x138xi32>
    %c300_i32 = arith.constant 300 : i32
    %16 = vector.broadcast %c300_i32 : i32 to vector<1x138xi32>
    %17 = arith.cmpi slt, %13, %16 : vector<1x138xi32>
    %18 = arith.andi %15, %17 : vector<1x138xi1>
    %c0_i32_8 = arith.constant 0 : i32
    %19 = arith.sitofp %c0_i32_8 : i32 to f32
    %20 = vector.shape_cast %18 : vector<1x138xi1> to vector<1x138xi1>
    %21 = vector.broadcast %20 : vector<1x138xi1> to vector<24x138xi1>
    %22 = vector.broadcast %19 : f32 to vector<24x138xf32>
    %23 = arith.select %21, %8, %22 : vector<24x138xi1>, vector<24x138xf32>
    %24 = arith.truncf %23 : vector<24x138xf32> to vector<24x138xbf16>
    %25 = vector.extract_strided_slice %24 {offsets = [0, 0], sizes = [24, 128], strides = [1, 1]} : vector<24x138xbf16> to vector<24x128xbf16>
    %26 = vector.extract_strided_slice %24 {offsets = [0, 5], sizes = [24, 128], strides = [1, 1]} : vector<24x138xbf16> to vector<24x128xbf16>
    %27 = vector.extract_strided_slice %24 {offsets = [0, 10], sizes = [24, 128], strides = [1, 1]} : vector<24x138xbf16> to vector<24x128xbf16>
    %28 = tpu.concatenate %25, %26, %27 in 0 : vector<24x128xbf16>, vector<24x128xbf16>, vector<24x128xbf16> -> vector<72x128xbf16>
    %c0_9 = arith.constant 0 : index
    %c0_10 = arith.constant 0 : index
    %29 = vector.load %arg5[%c0_9, %c0_10] : memref<40x72xbf16, #tpu.memory_space<vmem>>, vector<40x72xbf16>
    %cst = arith.constant dense<0.000000e+00> : vector<40x128xf32>
    %30 = tpu.matmul %29, %28, %cst {dimension_numbers = #tpu.dot_dimension_numbers<[1], [0], [0], [1], [0, 0, 1, 1], [], []>} : vector<40x72xbf16>, vector<72x128xbf16>, vector<40x128xf32> -> vector<40x128xf32>
    %c0_11 = arith.constant 0 : index
    %c0_12 = arith.constant 0 : index
    %31 = vector.load %arg6[%c0_11, %c0_12] : memref<40x1xf32, #tpu.memory_space<vmem>>, vector<40x1xf32>
    %32 = vector.broadcast %31 : vector<40x1xf32> to vector<40x128xf32>
    %33 = arith.addf %30, %32 : vector<40x128xf32>
    %c0_13 = arith.constant 0 : index
    %c0_14 = arith.constant 0 : index
    %c0_15 = arith.constant 0 : index
    %34 = vector.load %arg7[%c0_13, %c0_14, %c0_15] : memref<1x40x128xf32, #tpu.memory_space<vmem>>, vector<1x40x128xf32>
    %35 = vector.shape_cast %34 : vector<1x40x128xf32> to vector<40x128xf32>
    %36 = arith.addf %33, %35 : vector<40x128xf32>
    %c0_16 = arith.constant 0 : index
    %c0_17 = arith.constant 0 : index
    %c0_18 = arith.constant 0 : index
    %37 = vector.load %arg8[%c0_16, %c0_17, %c0_18] : memref<1x40x128xf32, #tpu.memory_space<vmem>>, vector<1x40x128xf32>
    %38 = vector.shape_cast %37 : vector<1x40x128xf32> to vector<40x128xf32>
    %39 = vector.shape_cast %36 : vector<40x128xf32> to vector<1x40x128xf32>
    tpu.vector_store %arg8[%c0_16, %c0_17, %c0_18], %39 {strides = array<i32>} : memref<1x40x128xf32, #tpu.memory_space<vmem>>, vector<1x40x128xf32>,
    return
  }
  func.func @transform_0(%arg0: i32, %arg1: i32) -> (i32, i32, i32) {
    %c0_i32 = arith.constant 0 : i32
    %c0_i32_0 = arith.constant 0 : i32
    return %arg1, %c0_i32, %arg0 : i32, i32, i32
  }
  func.func @transform_1(%arg0: i32, %arg1: i32) -> (i32, i32, i32) {
    %c1_i32 = arith.constant 1 : i32
    %0 = arith.muli %arg0, %c1_i32 : i32
    %c1_i32_0 = arith.constant 1 : i32
    %1 = arith.subi %0, %c1_i32_0 : i32
    %c0_i32 = arith.constant 0 : i32
    %2 = arith.maxsi %1, %c0_i32 : i32
    %c0_i32_1 = arith.constant 0 : i32
    %c0_i32_2 = arith.constant 0 : i32
    return %arg1, %c0_i32_1, %2 : i32, i32, i32
  }
  func.func @transform_2(%arg0: i32, %arg1: i32) -> (i32, i32, i32) {
    %c1_i32 = arith.constant 1 : i32
    %0 = arith.addi %arg0, %c1_i32 : i32
    %c1_i32_0 = arith.constant 1 : i32
    %1 = arith.muli %0, %c1_i32_0 : i32
    %c2_i32 = arith.constant 2 : i32
    %2 = arith.minsi %1, %c2_i32 : i32
    %c0_i32 = arith.constant 0 : i32
    %c0_i32_1 = arith.constant 0 : i32
    return %arg1, %c0_i32, %2 : i32, i32, i32
  }
  func.func @transform_3(%arg0: i32, %arg1: i32) -> (i32, i32) {
    %c0_i32 = arith.constant 0 : i32
    %c0_i32_0 = arith.constant 0 : i32
    %c0_i32_1 = arith.constant 0 : i32
    return %c0_i32, %c0_i32_0 : i32, i32
  }
  func.func @transform_4(%arg0: i32, %arg1: i32) -> (i32, i32) {
    %c0_i32 = arith.constant 0 : i32
    %c0_i32_0 = arith.constant 0 : i32
    %c0_i32_1 = arith.constant 0 : i32
    return %c0_i32, %c0_i32_0 : i32, i32
  }
  func.func @transform_5(%arg0: i32, %arg1: i32) -> (i32, i32, i32) {
    %c0_i32 = arith.constant 0 : i32
    %c0_i32_0 = arith.constant 0 : i32
    return %arg1, %c0_i32, %arg0 : i32, i32, i32
  }
  func.func @transform_6(%arg0: i32, %arg1: i32) -> (i32, i32, i32) {
    %c0_i32 = arith.constant 0 : i32
    %c0_i32_0 = arith.constant 0 : i32
    return %arg1, %c0_i32, %arg0 : i32, i32, i32
  }
}

</mosaic_0001>

<llo_original>
// kernel: tpu_custom_call.1
$region0: #{tpu_custom_call.1}
  #allocation0 [shape = 'u32[]', space=smem, size = 0x4, offset = 0x4, fixed_abs, tag = 'smem constant byte address 0x4 - core index']
  #allocation1 [shape = 'u32[72,128]{1,0:T(1,128)}', space=vmem, size = 0x9000, scoped, tag = 'internal scratch']
  %s0 = inlined_call_operand.hbm [shape: f32[2,24,300], index: 0, kind: input, shape index: {}]
  %s1 = inlined_call_operand.hbm [shape: f32[2,24,300], index: 1, kind: input, shape index: {}]
  %s2 = inlined_call_operand.hbm [shape: f32[2,24,300], index: 2, kind: input, shape index: {}]
  %s3 = inlined_call_operand.vmem [shape: bf16[40,72], index: 3, kind: input, shape index: {}]
  %s4 = inlined_call_operand.vmem [shape: f32[40,1], index: 4, kind: input, shape index: {}]
  %s5 = inlined_call_operand.hbm [shape: f32[2,40,300], index: 5, kind: input, shape index: {}]
  %s6 = inlined_call_operand.hbm [shape: f32[2,40,300], index: 6, kind: output, shape index: {}]
  %s7 = sld [smem:[#allocation0]]
  $region73: #{tpu_custom_call.1} parent=0
    _
  %s9 = ssub.s32 1, %s7
  %s10 = scalar_select 0, %s9, %s7
  $region1: #{tpu_custom_call.1} parent=0
    #allocation2 [shape = 'u8[24576]{0}', space=vmem, size = 0x6000, scoped, tag = 'input window, operand 0']
    #allocation3 [shape = 's32[2]{0}', space=sflag, size = 0x8, scoped, tag = 'scoped memory for tpu_custom_call.1']
    #allocation4 [shape = 's32[2]{0}', space=sflag, size = 0x8, scoped, tag = 'scoped memory for tpu_custom_call.1']
    #allocation5 [shape = 'u8[24576]{0}', space=vmem, size = 0x6000, scoped, tag = 'input window, operand 1']
    #allocation6 [shape = 's32[2]{0}', space=sflag, size = 0x8, scoped, tag = 'scoped memory for tpu_custom_call.1']
    #allocation7 [shape = 'u8[24576]{0}', space=vmem, size = 0x6000, scoped, tag = 'input window, operand 2']
    #allocation8 [shape = 'u8[40960]{0}', space=vmem, size = 0xa000, scoped, tag = 'input window, operand 5']
    #allocation9 [shape = 's32[2]{0}', space=sflag, size = 0x8, scoped, tag = 'scoped memory for tpu_custom_call.1']
    #allocation10 [shape = 'u8[40960]{0}', space=vmem, size = 0xa000, scoped, tag = 'output window, operand 0']
    %11 = vsyncpa [#allocation3], 0
    %s12 = scalar_lea.sflag [#allocation3], 1
    %13 = vsyncpa %s12, 0
    %14 = vsyncpa [#allocation6], 0
    %s15 = scalar_lea.sflag [#allocation6], 1
    %16 = vsyncpa %s15, 0
    %17 = vsyncpa [#allocation9], 0
    %s18 = scalar_lea.sflag [#allocation9], 1
    %19 = vsyncpa %s18, 0
    %20 = vsyncpa [#allocation4], 0
    %s21 = scalar_lea.sflag [#allocation4], 1
    %22 = vsyncpa %s21, 0
    loop: start=0, step=1, limit=8
    $region2: #{tpu_custom_call.1} parent=1 // loop_pre_header
      _
    $region3: #{tpu_custom_call.1} parent=1 // loop_header
      %s24 = sphi 0, %s28
      %p25 = scmp.ge.s32.totalorder %s24, 8
      %s31 = sphi 0, %s43
      %s32 = sphi 0, %s39
      %s33 = sphi 0, %s31
      %s34 = sphi 0, %s32
      %s35 = sphi 0, %s33
      %s36 = sphi 0, %s34
      %s48 = sphi 0, %s50
      %s51 = sphi 0, %s48
      %s52 = sphi 0, %s51
      %s68 = sphi 0, %s52
      %s82 = sphi 0, %s84
      %s85 = sphi 0, %s82
      %s86 = sphi 0, %s85
      %s102 = sphi 0, %s86
      %s116 = sphi 0, %s118
      %s119 = sphi 0, %s116
      %s120 = sphi 0, %s119
      %s136 = sphi 0, %s120
      %s140 = sphi 0, %s140
      %s142 = sphi 0, %s140
      %s143 = sphi 0, %s142
      %s157 = sphi 0, %s143
      %s161 = sphi 0, %s161
      %s163 = sphi 0, %s161
      %s164 = sphi 0, %s163
      %s178 = sphi 0, %s164
      %s186 = sphi 0, %s188
      %s189 = sphi 0, %s186
      %s190 = sphi 0, %s189
      %s206 = sphi 0, %s190
      %s214 = sphi 0, %s216
      %s217 = sphi 0, %s214
      %s218 = sphi 0, %s217
      %s234 = sphi 0, %s218
    $region4: #{tpu_custom_call.1} parent=1 // loop_header_branch
      %27 = sbr.rel (%p25) target = $region8
    $region5: #{tpu_custom_call.1} parent=1 // loop_body
      %s29 = ssub.s32 %s24, 1
      %s30 = ssub.s32 %s24, 2
      %s37 = sadd.s32 1, %s32
      %p38 = scmp.ge.s32.totalorder %s37, 2
      %s39 = scalar_select %p38, 0, %s37
      %s40 = sadd.s32 1, %s31
      %s41 = scalar_select %p38, %s40, %s31
      %p42 = scmp.ge.s32.totalorder %s41, 3
      %s43 = scalar_select %p42, 0, %s41
      %s44 = ssub.s32 %s32, %s39
      %s45 = ssub.s32 %s31, %s43
      %s46 = sor.u32 %s44, %s45
      %p47 = scmp.eq.s32.totalorder %s46, 0
      %s49 = sadd.s32 %s48, 1
      %s50 = scalar_select %p47, %s48, %s49
      %p53 = pneg %p47
      %p54 = scmp.eq.s32.totalorder %s24, 5
      %p55 = por %p53, %p54
      %p56 = scmp.ne.s32.totalorder %s48, %s51
      %p57 = scmp.eq.s32.totalorder %s24, 0
      %p58 = por %p56, %p57
      %p59 = scmp.ne.s32.totalorder %s48, %s51
      %p60 = scmp.eq.s32.totalorder %s29, 5
      %p61 = por %p59, %p60
      %p62 = scmp.ne.s32.totalorder %s51, %s52
      %p63 = scmp.eq.s32.totalorder %s29, 0
      %p64 = por %p62, %p63
      %p65 = scmp.ne.s32.totalorder %s51, %s52
      %p66 = scmp.eq.s32.totalorder %s30, 5
      %p67 = por %p65, %p66
      %p69 = scmp.ne.s32.totalorder %s52, %s68
      %p70 = scmp.eq.s32.totalorder %s30, 0
      %p71 = por %p69, %p70
      %s72 = ssub.s32 %s31, 1
      %p73 = scmp.gt.s32.totalorder %s72, 0
      %s74 = scalar_select %p73, %s72, 0
      %s75 = ssub.s32 %s43, 1
      %p76 = scmp.gt.s32.totalorder %s75, 0
      %s77 = scalar_select %p76, %s75, 0
      %s78 = ssub.s32 %s32, %s39
      %s79 = ssub.s32 %s74, %s77
      %s80 = sor.u32 %s78, %s79
      %p81 = scmp.eq.s32.totalorder %s80, 0
      %s83 = sadd.s32 %s82, 1
      %s84 = scalar_select %p81, %s82, %s83
      %p87 = pneg %p81
      %p88 = scmp.eq.s32.totalorder %s24, 5
      %p89 = por %p87, %p88
      %p90 = scmp.ne.s32.totalorder %s82, %s85
      %p91 = scmp.eq.s32.totalorder %s24, 0
      %p92 = por %p90, %p91
      %p93 = scmp.ne.s32.totalorder %s82, %s85
      %p94 = scmp.eq.s32.totalorder %s29, 5
      %p95 = por %p93, %p94
      %p96 = scmp.ne.s32.totalorder %s85, %s86
      %p97 = scmp.eq.s32.totalorder %s29, 0
      %p98 = por %p96, %p97
      %p99 = scmp.ne.s32.totalorder %s85, %s86
      %p100 = scmp.eq.s32.totalorder %s30, 5
      %p101 = por %p99, %p100
      %p103 = scmp.ne.s32.totalorder %s86, %s102
      %p104 = scmp.eq.s32.totalorder %s30, 0
      %p105 = por %p103, %p104
      %s106 = sadd.s32 %s31, 1
      %p107 = scmp.lt.s32.totalorder %s106, 2
      %s108 = scalar_select %p107, %s106, 2
      %s109 = sadd.s32 %s43, 1
      %p110 = scmp.lt.s32.totalorder %s109, 2
      %s111 = scalar_select %p110, %s109, 2
      %s112 = ssub.s32 %s32, %s39
      %s113 = ssub.s32 %s108, %s111
      %s114 = sor.u32 %s112, %s113
      %p115 = scmp.eq.s32.totalorder %s114, 0
      %s117 = sadd.s32 %s116, 1
      %s118 = scalar_select %p115, %s116, %s117
      %p121 = pneg %p115
      %p122 = scmp.eq.s32.totalorder %s24, 5
      %p123 = por %p121, %p122
      %p124 = scmp.ne.s32.totalorder %s116, %s119
      %p125 = scmp.eq.s32.totalorder %s24, 0
      %p126 = por %p124, %p125
      %p127 = scmp.ne.s32.totalorder %s116, %s119
      %p128 = scmp.eq.s32.totalorder %s29, 5
      %p129 = por %p127, %p128
      %p130 = scmp.ne.s32.totalorder %s119, %s120
      %p131 = scmp.eq.s32.totalorder %s29, 0
      %p132 = por %p130, %p131
      %p133 = scmp.ne.s32.totalorder %s119, %s120
      %p134 = scmp.eq.s32.totalorder %s30, 5
      %p135 = por %p133, %p134
      %p137 = scmp.ne.s32.totalorder %s120, %s136
      %p138 = scmp.eq.s32.totalorder %s30, 0
      %p139 = por %p137, %p138
      %s141 = sadd.s32 %s140, 1
      %p144 = scmp.eq.s32.totalorder %s24, 5
      %p145 = scmp.ne.s32.totalorder %s140, %s142
      %p146 = scmp.eq.s32.totalorder %s24, 0
      %p147 = por %p145, %p146
      %p148 = scmp.ne.s32.totalorder %s140, %s142
      %p149 = scmp.eq.s32.totalorder %s29, 5
      %p150 = por %p148, %p149
      %p151 = scmp.ne.s32.totalorder %s142, %s143
      %p152 = scmp.eq.s32.totalorder %s29, 0
      %p153 = por %p151, %p152
      %p154 = scmp.ne.s32.totalorder %s142, %s143
      %p155 = scmp.eq.s32.totalorder %s30, 5
      %p156 = por %p154, %p155
      %p158 = scmp.ne.s32.totalorder %s143, %s157
      %p159 = scmp.eq.s32.totalorder %s30, 0
      %p160 = por %p158, %p159
      %s162 = sadd.s32 %s161, 1
      %p165 = scmp.eq.s32.totalorder %s24, 5
      %p166 = scmp.ne.s32.totalorder %s161, %s163
      %p167 = scmp.eq.s32.totalorder %s24, 0
      %p168 = por %p166, %p167
      %p169 = scmp.ne.s32.totalorder %s161, %s163
      %p170 = scmp.eq.s32.totalorder %s29, 5
      %p171 = por %p169, %p170
      %p172 = scmp.ne.s32.totalorder %s163, %s164
      %p173 = scmp.eq.s32.totalorder %s29, 0
      %p174 = por %p172, %p173
      %p175 = scmp.ne.s32.totalorder %s163, %s164
      %p176 = scmp.eq.s32.totalorder %s30, 5
      %p177 = por %p175, %p176
      %p179 = scmp.ne.s32.totalorder %s164, %s178
      %p180 = scmp.eq.s32.totalorder %s30, 0
      %p181 = por %p179, %p180
      %s182 = ssub.s32 %s32, %s39
      %s183 = ssub.s32 %s31, %s43
      %s184 = sor.u32 %s182, %s183
      %p185 = scmp.eq.s32.totalorder %s184, 0
      %s187 = sadd.s32 %s186, 1
      %s188 = scalar_select %p185, %s186, %s187
      %p191 = pneg %p185
      %p192 = scmp.eq.s32.totalorder %s24, 5
      %p193 = por %p191, %p192
      %p194 = scmp.ne.s32.totalorder %s186, %s189
      %p195 = scmp.eq.s32.totalorder %s24, 0
      %p196 = por %p194, %p195
      %p197 = scmp.ne.s32.totalorder %s186, %s189
      %p198 = scmp.eq.s32.totalorder %s29, 5
      %p199 = por %p197, %p198
      %p200 = scmp.ne.s32.totalorder %s189, %s190
      %p201 = scmp.eq.s32.totalorder %s29, 0
      %p202 = por %p200, %p201
      %p203 = scmp.ne.s32.totalorder %s189, %s190
      %p204 = scmp.eq.s32.totalorder %s30, 5
      %p205 = por %p203, %p204
      %p207 = scmp.ne.s32.totalorder %s190, %s206
      %p208 = scmp.eq.s32.totalorder %s30, 0
      %p209 = por %p207, %p208
      %s210 = ssub.s32 %s32, %s39
      %s211 = ssub.s32 %s31, %s43
      %s212 = sor.u32 %s210, %s211
      %p213 = scmp.eq.s32.totalorder %s212, 0
      %s215 = sadd.s32 %s214, 1
      %s216 = scalar_select %p213, %s214, %s215
      %p219 = pneg %p213
      %p220 = scmp.eq.s32.totalorder %s24, 5
      %p221 = por %p219, %p220
      %p222 = scmp.ne.s32.totalorder %s214, %s217
      %p223 = scmp.eq.s32.totalorder %s24, 0
      %p224 = por %p222, %p223
      %p225 = scmp.ne.s32.totalorder %s214, %s217
      %p226 = scmp.eq.s32.totalorder %s29, 5
      %p227 = por %p225, %p226
      %p228 = scmp.ne.s32.totalorder %s217, %s218
      %p229 = scmp.eq.s32.totalorder %s29, 0
      %p230 = por %p228, %p229
      %p231 = scmp.ne.s32.totalorder %s217, %s218
      %p232 = scmp.eq.s32.totalorder %s30, 5
      %p233 = por %p231, %p232
      %p235 = scmp.ne.s32.totalorder %s218, %s234
      %p236 = scmp.eq.s32.totalorder %s30, 0
      %p237 = por %p235, %p236
      %p238 = scmp.le.s32.totalorder 1, %s24
      %p239 = scmp.lt.s32.totalorder %s24, 7
      %p240 = pnand %p238, %p239
      %p241 = pneg %p240
      // Predicated region
      $region9: #{tpu_custom_call.1} parent=5 // pred_check
        _
      $region10: #{tpu_custom_call.1} parent=5 // pred_check_branch
        %243 = sbr.rel (%p240) target = $region12
      $region11: #{tpu_custom_call.1} parent=5 // pred_region
        %s244 = ssub.s32 %s24, 1
        // Predicated region
        $region13: #{tpu_custom_call.1} parent=11 // pred_check
          %p245 = pneg %p153
        $region14: #{tpu_custom_call.1} parent=11 // pred_check_branch
          %247 = sbr.rel (%p245) target = $region16
        $region15: #{tpu_custom_call.1} parent=11 // pred_region
          _
        $region16: #{tpu_custom_call.1} parent=11 // pred_fallthru
          _
        // Predicated region
        $region17: #{tpu_custom_call.1} parent=11 // pred_check
          %p248 = pneg %p174
        $region18: #{tpu_custom_call.1} parent=11 // pred_check_branch
          %250 = sbr.rel (%p248) target = $region20
        $region19: #{tpu_custom_call.1} parent=11 // pred_region
          _
        $region20: #{tpu_custom_call.1} parent=11 // pred_fallthru
          _
      $region12: #{tpu_custom_call.1} parent=5 // pred_fallthru
        _
      %p251 = scmp.lt.s32.totalorder %s24, 6
      // Predicated region
      $region21: #{tpu_custom_call.1} parent=5 // pred_check
        %p252 = pneg %p251
      $region22: #{tpu_custom_call.1} parent=5 // pred_check_branch
        %254 = sbr.rel (%p252) target = $region24
      $region23: #{tpu_custom_call.1} parent=5 // pred_region
        // Predicated region
        $region25: #{tpu_custom_call.1} parent=23 // pred_check
          %p255 = pneg %p58
        $region26: #{tpu_custom_call.1} parent=23 // pred_check_branch
          %257 = sbr.rel (%p255) target = $region28
        $region27: #{tpu_custom_call.1} parent=23 // pred_region
          %s258 = sand.u32 %s48, 1
          %s259 = scalar_lea.sflag [#allocation3], %s258
          %s260 = sand.u32 %s48, 1
          %s261 = smul.addr %s260, 24
          %s262 = scalar_lea.vmem [#allocation2], %s261
          %264 = vsyncadd %s259, 0
          %s265 = smul.addr %s32, 9
          %s266 = sadd.s32 %s31, %s265
          %s267 = smul.addr %s266, 8
          %s268 = scalar_lea.hbm %s0, %s267
          %s269 = sshll.u32 %s268, 4
          %s270 = int_to_ptr.hbm [resolvable:$true] %s269
          %s271 = sshll.u32 %s262, 4
          %s272 = int_to_ptr.vmem [resolvable:$true] %s271
          %277 = dma.hbm_to_vmem [thread:$0]  %s270, 384, %s272, %s259, 384, 128, 8
        $region28: #{tpu_custom_call.1} parent=23 // pred_fallthru
          _
        // Predicated region
        $region29: #{tpu_custom_call.1} parent=23 // pred_check
          %p278 = pneg %p92
        $region30: #{tpu_custom_call.1} parent=23 // pred_check_branch
          %280 = sbr.rel (%p278) target = $region32
        $region31: #{tpu_custom_call.1} parent=23 // pred_region
          %s281 = sand.u32 %s24, 1
          %s282 = scalar_lea.sflag [#allocation6], %s281
          %s283 = sand.u32 %s82, 1
          %s284 = smul.addr %s283, 24
          %s285 = scalar_lea.vmem [#allocation5], %s284
          %s286 = ssub.s32 %s31, 1
          %p287 = scmp.gt.s32.totalorder %s286, 0
          %s288 = scalar_select %p287, %s286, 0
          %290 = vsyncadd %s282, 0
          %s291 = smul.addr %s32, 9
          %s292 = sadd.s32 %s288, %s291
          %s293 = smul.addr %s292, 8
          %s294 = scalar_lea.hbm %s1, %s293
          %s295 = sshll.u32 %s294, 4
          %s296 = int_to_ptr.hbm [resolvable:$true] %s295
          %s297 = sshll.u32 %s285, 4
          %s298 = int_to_ptr.vmem [resolvable:$true] %s297
          %303 = dma.hbm_to_vmem [thread:$0]  %s296, 384, %s298, %s282, 384, 128, 8
        $region32: #{tpu_custom_call.1} parent=23 // pred_fallthru
          _
        // Predicated region
        $region33: #{tpu_custom_call.1} parent=23 // pred_check
          %p304 = pneg %p126
        $region34: #{tpu_custom_call.1} parent=23 // pred_check_branch
          %306 = sbr.rel (%p304) target = $region36
        $region35: #{tpu_custom_call.1} parent=23 // pred_region
          %s307 = sand.u32 %s24, 1
          %s308 = scalar_lea.sflag [#allocation6], %s307
          %s309 = sand.u32 %s116, 1
          %s310 = smul.addr %s309, 24
          %s311 = scalar_lea.vmem [#allocation7], %s310
          %s312 = sadd.s32 %s31, 1
          %p313 = scmp.lt.s32.totalorder %s312, 2
          %s314 = scalar_select %p313, %s312, 2
          %316 = vsyncadd %s308, 0
          %s317 = smul.addr %s32, 9
          %s318 = sadd.s32 %s314, %s317
          %s319 = smul.addr %s318, 8
          %s320 = scalar_lea.hbm %s2, %s319
          %s321 = sshll.u32 %s320, 4
          %s322 = int_to_ptr.hbm [resolvable:$true] %s321
          %s323 = sshll.u32 %s311, 4
          %s324 = int_to_ptr.vmem [resolvable:$true] %s323
          %329 = dma.hbm_to_vmem [thread:$0]  %s322, 384, %s324, %s308, 384, 128, 8
        $region36: #{tpu_custom_call.1} parent=23 // pred_fallthru
          _
        // Predicated region
        $region37: #{tpu_custom_call.1} parent=23 // pred_check
          %p330 = pneg %p196
        $region38: #{tpu_custom_call.1} parent=23 // pred_check_branch
          %332 = sbr.rel (%p330) target = $region40
        $region39: #{tpu_custom_call.1} parent=23 // pred_region
          %s333 = sand.u32 %s186, 1
          %s334 = scalar_lea.sflag [#allocation9], %s333
          %s335 = sand.u32 %s186, 1
          %s336 = smul.addr %s335, 40
          %s337 = scalar_lea.vmem [#allocation8], %s336
          %339 = vsyncadd %s334, 0
          %s340 = smul.addr %s32, 15
          %s341 = sadd.s32 %s31, %s340
          %s342 = smul.addr %s341, 8
          %s343 = scalar_lea.hbm %s5, %s342
          %s344 = sshll.u32 %s343, 4
          %s345 = int_to_ptr.hbm [resolvable:$true] %s344
          %s346 = sshll.u32 %s337, 4
          %s347 = int_to_ptr.vmem [resolvable:$true] %s346
          %352 = dma.hbm_to_vmem [thread:$0]  %s345, 640, %s347, %s334, 384, 128, 8
        $region40: #{tpu_custom_call.1} parent=23 // pred_fallthru
          _
      $region24: #{tpu_custom_call.1} parent=5 // pred_fallthru
        _
      %p353 = scmp.le.s32.totalorder 1, %s24
      %p354 = scmp.lt.s32.totalorder %s24, 7
      %p355 = pnand %p353, %p354
      %p356 = pneg %p355
      // Predicated region
      $region41: #{tpu_custom_call.1} parent=5 // pred_check
        _
      $region42: #{tpu_custom_call.1} parent=5 // pred_check_branch
        %358 = sbr.rel (%p355) target = $region44
      $region43: #{tpu_custom_call.1} parent=5 // pred_region
        %s359 = ssub.s32 %s24, 1
        %s360 = sand.u32 %s51, 1
        %s361 = scalar_lea.sflag [#allocation3], %s360
        %s362 = sand.u32 %s51, 1
        %s363 = smul.addr %s362, 24
        %s364 = scalar_lea.vmem [#allocation2], %s363
        // Predicated region
        $region45: #{tpu_custom_call.1} parent=43 // pred_check
          %p365 = pneg %p64
        $region46: #{tpu_custom_call.1} parent=43 // pred_check_branch
          %367 = sbr.rel (%p365) target = $region48
        $region47: #{tpu_custom_call.1} parent=43 // pred_region
          %369 = dma.done %s361, 384
        $region48: #{tpu_custom_call.1} parent=43 // pred_fallthru
          _
        %s370 = sand.u32 %s29, 1
        %s371 = scalar_lea.sflag [#allocation6], %s370
        %s372 = sand.u32 %s85, 1
        %s373 = smul.addr %s372, 24
        %s374 = scalar_lea.vmem [#allocation5], %s373
        // Predicated region
        $region49: #{tpu_custom_call.1} parent=43 // pred_check
          %p375 = pneg %p98
        $region50: #{tpu_custom_call.1} parent=43 // pred_check_branch
          %377 = sbr.rel (%p375) target = $region52
        $region51: #{tpu_custom_call.1} parent=43 // pred_region
          %379 = dma.done %s371, 384
        $region52: #{tpu_custom_call.1} parent=43 // pred_fallthru
          _
        %s380 = sand.u32 %s29, 1
        %s381 = scalar_lea.sflag [#allocation6], %s380
        %s382 = sand.u32 %s119, 1
        %s383 = smul.addr %s382, 24
        %s384 = scalar_lea.vmem [#allocation7], %s383
        // Predicated region
        $region53: #{tpu_custom_call.1} parent=43 // pred_check
          %p385 = pneg %p132
        $region54: #{tpu_custom_call.1} parent=43 // pred_check_branch
          %387 = sbr.rel (%p385) target = $region56
        $region55: #{tpu_custom_call.1} parent=43 // pred_region
          %389 = dma.done %s381, 384
        $region56: #{tpu_custom_call.1} parent=43 // pred_fallthru
          _
        %s390 = sand.u32 %s189, 1
        %s391 = scalar_lea.sflag [#allocation9], %s390
        %s392 = sand.u32 %s189, 1
        %s393 = smul.addr %s392, 40
        %s394 = scalar_lea.vmem [#allocation8], %s393
        // Predicated region
        $region57: #{tpu_custom_call.1} parent=43 // pred_check
          %p395 = pneg %p202
        $region58: #{tpu_custom_call.1} parent=43 // pred_check_branch
          %397 = sbr.rel (%p395) target = $region60
        $region59: #{tpu_custom_call.1} parent=43 // pred_region
          %399 = dma.done %s391, 640
        $region60: #{tpu_custom_call.1} parent=43 // pred_fallthru
          _
        %s400 = sand.u32 %s51, 1
        %s401 = scalar_lea.sflag [#allocation3], %s400
        %s402 = sand.u32 %s51, 1
        %s403 = smul.addr %s402, 24
        %s404 = scalar_lea.vmem [#allocation2], %s403
        %p405 = pneg %p64
        %p406 = pneg %p61
        %s407 = sand.u32 %s29, 1
        %s408 = scalar_lea.sflag [#allocation6], %s407
        %s409 = sand.u32 %s85, 1
        %s410 = smul.addr %s409, 24
        %s411 = scalar_lea.vmem [#allocation5], %s410
        %p412 = pneg %p98
        %p413 = pneg %p95
        %s414 = sand.u32 %s29, 1
        %s415 = scalar_lea.sflag [#allocation6], %s414
        %s416 = sand.u32 %s119, 1
        %s417 = smul.addr %s416, 24
        %s418 = scalar_lea.vmem [#allocation7], %s417
        %p419 = pneg %p132
        %p420 = pneg %p129
        %p421 = pneg %p153
        %p422 = pneg %p150
        %p423 = pneg %p174
        %p424 = pneg %p171
        %s425 = sand.u32 %s189, 1
        %s426 = scalar_lea.sflag [#allocation9], %s425
        %s427 = sand.u32 %s189, 1
        %s428 = smul.addr %s427, 40
        %s429 = scalar_lea.vmem [#allocation8], %s428
        %p430 = pneg %p202
        %p431 = pneg %p199
        %p432 = pneg %p230
        %p433 = pneg %p227
        %s434 = sand.u32 %s217, 1
        %s435 = scalar_lea.sflag [#allocation4], %s434
        %s436 = sand.u32 %s217, 1
        %s437 = smul.addr %s436, 40
        %s438 = scalar_lea.vmem [#allocation10], %s437
        %s439 = ssub.s32 %s33, 1
        %p440 = scmp.gt.s32.totalorder %s439, 0
        %s441 = scalar_select %p440, %s439, 0
        %s442 = sadd.s32 %s33, 1
        %p443 = scmp.lt.s32.totalorder %s442, 2
        %s444 = scalar_select %p443, %s442, 2
        %v446 = vld [vmem:[%s374] sm:$0xff]
        %v447 = vld [vmem:[%s374 + $0x8] sm:$0xff]
        %v448 = vld [vmem:[%s374 + $0x10] sm:$0xff]
        %v449 = vld [vmem:[%s364] sm:$0xff]
        %v450 = vld [vmem:[%s364 + $0x8] sm:$0xff]
        %v451 = vld [vmem:[%s364 + $0x10] sm:$0xff]
        %v452 = vld [vmem:[%s384] sm:$0xff]
        %v453 = vld [vmem:[%s384 + $0x8] sm:$0xff]
        %v454 = vld [vmem:[%s384 + $0x10] sm:$0xff]
        %458 = vrot.lane.b32.xlu0 %v446, 5
        %v459 = vpop.permute.xlu0 %458
        %460 = vrot.lane.b32.xlu0 %v447, 5
        %v461 = vpop.permute.xlu0 %460
        %462 = vrot.lane.b32.xlu0 %v448, 5
        %v463 = vpop.permute.xlu0 %462
        %470 = vrot.lane.b32.xlu0 %v449, 5
        %v471 = vpop.permute.xlu0 %470
        %472 = vrot.lane.b32.xlu0 %v450, 5
        %v473 = vpop.permute.xlu0 %472
        %474 = vrot.lane.b32.xlu0 %v451, 5
        %v475 = vpop.permute.xlu0 %474
        %482 = vrot.lane.b32.xlu0 %v452, 5
        %v483 = vpop.permute.xlu0 %482
        %484 = vrot.lane.b32.xlu0 %v453, 5
        %v485 = vpop.permute.xlu0 %484
        %486 = vrot.lane.b32.xlu0 %v454, 5
        %v487 = vpop.permute.xlu0 %486
        %vm491 = vcmask 39936
        %v492 = vsel %vm491, %v459, %v471
        %v493 = vsel %vm491, %v461, %v473
        %v494 = vsel %vm491, %v463, %v475
        %v495 = vsel %vm491, %v471, %v483
        %v496 = vsel %vm491, %v473, %v485
        %v497 = vsel %vm491, %v475, %v487
        %s498 = smul.u32 %s33, 128
        %s499 = ssub.s32 %s498, 5
        %v500 = vlaneseq
        %v501 = vand.u32 %v500, 127
        %v502 = vadd.s32 %v501, 128
        %v503 = vstv %s499
        %v504 = vadd.s32 %v503, %v501
        %v505 = vadd.s32 %v503, %v502
        %vm506 = vcmp.ge.s32.totalorder %v504, 0
        %vm507 = vcmp.ge.s32.totalorder %v505, 0
        %vm508 = vcmp.lt.s32.totalorder %v504, 300
        %vm509 = vcmp.lt.s32.totalorder %v505, 300
        %vm510 = vmand %vm506, %vm508
        %vm511 = vmand %vm507, %vm509
        %v512 = vsel %vm510, 1, 0
        %v513 = vsel %vm511, 1, 0
        %vm514 = vcmp.eq.s32.totalorder %v512, 1
        %vm515 = vcmp.eq.s32.totalorder %v513, 1
        %v516 = vsel %vm514, %v492, 0.0
        %v517 = vsel %vm515, %v495, 0.0
        %v518 = vsel %vm514, %v493, 0.0
        %v519 = vsel %vm515, %v496, 0.0
        %v520 = vsel %vm514, %v494, 0.0
        %v521 = vsel %vm515, %v497, 0.0
        %v522 = vpack.c.bf16 %v517, %v516
        %v523 = vpack.c.bf16 %v519, %v518
        %v524 = vpack.c.bf16 %v521, %v520
        %v528 = vunpack.c.l.b16 %v522
        %v529 = vunpack.c.l.b16 %v523
        %v530 = vunpack.c.l.b16 %v524
        %v531 = vpack.c.b16 %v529, %v528
        %v532 = vpack.c.b16 %v530, %v530
        %v534 = vunpack.c.h.b16 %v522
        %v535 = vunpack.c.h.b16 %v523
        %v536 = vunpack.c.h.b16 %v524
        %v537 = vpack.c.b16 %v528, %v528
        %v538 = vpack.c.b16 %v534, %v534
        %v539 = vpack.c.b16 %v530, %v529
        %v540 = vpack.c.b16 %v536, %v535
        %541 = vrot.lane.b32.xlu0 %v537, 123
        %v542 = vpop.permute.xlu0 %541
        %543 = vrot.lane.b32.xlu0 %v538, 123
        %v544 = vpop.permute.xlu0 %543
        %545 = vrot.lane.b32.xlu0 %v539, 123
        %v546 = vpop.permute.xlu0 %545
        %547 = vrot.lane.b32.xlu0 %v540, 123
        %v548 = vpop.permute.xlu0 %547
        %vm549 = vcmask 1006592
        %v550 = vsel %vm549, %v542, %v544
        %v551 = vsel %vm549, %v546, %v548
        %v553 = vpack.c.b16 %v535, %v534
        %v554 = vpack.c.b16 %v536, %v536
        %555 = vrot.lane.b32.xlu0 %v531, 118
        %v556 = vpop.permute.xlu0 %555
        %557 = vrot.lane.b32.xlu0 %v553, 118
        %v558 = vpop.permute.xlu0 %557
        %559 = vrot.lane.b32.xlu0 %v532, 118
        %v560 = vpop.permute.xlu0 %559
        %561 = vrot.lane.b32.xlu0 %v554, 118
        %v562 = vpop.permute.xlu0 %561
        %vm563 = vcmask 965632
        %v564 = vsel %vm563, %v556, %v558
        %v565 = vsel %vm563, %v560, %v562
        %vm567 = vcmask 1043456
        %v570 = vsel %vm567, %v532, %v550
        %v572 = vld [vmem:[%s3] sm:$0xf]
        %v573 = vld [vmem:[%s3 + $0x4] sm:$0xf]
        %v574 = vld [vmem:[%s3 + $0x8] sm:$0xf]
        %v575 = vld [vmem:[%s3 + $0xc] sm:$0xf]
        %v576 = vld [vmem:[%s3 + $0x10] sm:$0xf]
        %v577 = vld [vmem:[%s4] sm:$0xff]
        %v578 = vld [vmem:[%s4 + $0x8] sm:$0xff]
        %v579 = vld [vmem:[%s4 + $0x10] sm:$0xff]
        %v580 = vld [vmem:[%s4 + $0x18] sm:$0xff]
        %v581 = vld [vmem:[%s4 + $0x20] sm:$0xff]
        %583 = vset.pattern.permute.xlu0 0
        %584 = vperm.xlu0 %583, %v577
        %v585 = vpop.permute.xlu0 %584
        %588 = vset.pattern.permute.xlu0 0
        %589 = vperm.xlu0 %588, %v578
        %v590 = vpop.permute.xlu0 %589
        %593 = vset.pattern.permute.xlu0 0
        %594 = vperm.xlu0 %593, %v579
        %v595 = vpop.permute.xlu0 %594
        %598 = vset.pattern.permute.xlu0 0
        %599 = vperm.xlu0 %598, %v580
        %v600 = vpop.permute.xlu0 %599
        %603 = vset.pattern.permute.xlu0 0
        %604 = vperm.xlu0 %603, %v581
        %v605 = vpop.permute.xlu0 %604
        %v612 = vunpack.c.l.b16 %v572
        %v613 = vunpack.c.l.b16 %v573
        %v614 = vunpack.c.l.b16 %v574
        %v615 = vunpack.c.l.b16 %v575
        %v616 = vunpack.c.l.b16 %v576
        %v617 = vpack.c.b16 %v613, %v612
        %v618 = vpack.c.b16 %v615, %v614
        %v619 = vpack.c.b16 %v616, %v616
        %vm620 = vcmask 588800
        %v622 = vsel %vm620, %v617, 0
        %v625 = vsel %vm620, %v618, 0
        %v628 = vsel %vm620, %v619, 0
        %v631 = vsel %vm567, %v565, 0
        %633 = vmatpush.bf16.msra.mxu0 0
        %634 = vmatpush.bf16.msra.mxu0 0
        %635 = vmatpush.bf16.msra.mxu0 0
        %636 = vmatpush.bf16.msra.mxu0 %v631
        %637 = vmatpush.bf16.msra.mxu0 %v564
        %638 = vmatpush.bf16.msra.mxu0 %v551
        %639 = vmatpush.bf16.msra.mxu0 %v570
        %640 = vmatpush.bf16.msra.mxu0 %v531
        %641 = vmatmul.bf16.gmra.mxu0 %v622
        %v642 = vpop.f32.mrf.mxu0
        %v643 = vadd.f32 %v585, %v642
        %v644 = vpop.f32.mrf.mxu0
        %v645 = vadd.f32 %v590, %v644
        %646 = vmatmul.bf16.gmra.mxu0 %v625
        %v647 = vpop.f32.mrf.mxu0
        %v648 = vadd.f32 %v595, %v647
        %v649 = vpop.f32.mrf.mxu0
        %v650 = vadd.f32 %v600, %v649
        %651 = vmatmul.bf16.gmra.mxu0 %v628
        %v652 = vpop.f32.mrf.mxu0
        %v653 = vadd.f32 %v605, %v652
        %v654 = vpop.f32.mrf.mxu0
        %655 = vdwg.mxu0
        %v656 = vld [vmem:[%s394] sm:$0xff]
        %v657 = vld [vmem:[%s394 + $0x8] sm:$0xff]
        %v658 = vld [vmem:[%s394 + $0x10] sm:$0xff]
        %v659 = vld [vmem:[%s394 + $0x18] sm:$0xff]
        %v660 = vld [vmem:[%s394 + $0x20] sm:$0xff]
        %v661 = vadd.f32 %v643, %v656
        %v662 = vadd.f32 %v645, %v657
        %v663 = vadd.f32 %v648, %v658
        %v664 = vadd.f32 %v650, %v659
        %v665 = vadd.f32 %v653, %v660
        %666 = vst [vmem:[%s438] sm:$0xff] %v661
        %667 = vst [vmem:[%s438 + $0x8] sm:$0xff] %v662
        %668 = vst [vmem:[%s438 + $0x10] sm:$0xff] %v663
        %669 = vst [vmem:[%s438 + $0x18] sm:$0xff] %v664
        %670 = vst [vmem:[%s438 + $0x20] sm:$0xff] %v665
        %s671 = sand.u32 %s217, 1
        %s672 = scalar_lea.sflag [#allocation4], %s671
        %s673 = sand.u32 %s217, 1
        %s674 = smul.addr %s673, 40
        %s675 = scalar_lea.vmem [#allocation10], %s674
        // Predicated region
        $region61: #{tpu_custom_call.1} parent=43 // pred_check
          %p676 = pneg %p227
        $region62: #{tpu_custom_call.1} parent=43 // pred_check_branch
          %678 = sbr.rel (%p676) target = $region64
        $region63: #{tpu_custom_call.1} parent=43 // pred_region
          %680 = vsyncadd %s672, 0
          %s681 = smul.addr %s34, 15
          %s682 = sadd.s32 %s33, %s681
          %s683 = smul.addr %s682, 8
          %s684 = scalar_lea.hbm %s6, %s683
          %s685 = sshll.u32 %s675, 4
          %s686 = int_to_ptr.vmem [resolvable:$true] %s685
          %s687 = sshll.u32 %s684, 4
          %s688 = int_to_ptr.hbm [resolvable:$true] %s687
          %693 = dma.vmem_to_hbm [thread:$0]  %s686, 640, %s688, %s672, 128, 384, 8
        $region64: #{tpu_custom_call.1} parent=43 // pred_fallthru
          _
      $region44: #{tpu_custom_call.1} parent=5 // pred_fallthru
        _
      %p694 = scmp.le.s32.totalorder 2, %s24
      // Predicated region
      $region65: #{tpu_custom_call.1} parent=5 // pred_check
        %p695 = pneg %p694
      $region66: #{tpu_custom_call.1} parent=5 // pred_check_branch
        %697 = sbr.rel (%p695) target = $region68
      $region67: #{tpu_custom_call.1} parent=5 // pred_region
        %s698 = ssub.s32 %s24, 2
        // Predicated region
        $region69: #{tpu_custom_call.1} parent=67 // pred_check
          %p699 = pneg %p233
        $region70: #{tpu_custom_call.1} parent=67 // pred_check_branch
          %701 = sbr.rel (%p699) target = $region72
        $region71: #{tpu_custom_call.1} parent=67 // pred_region
          %s702 = sand.u32 %s218, 1
          %s703 = scalar_lea.sflag [#allocation4], %s702
          %s704 = sand.u32 %s218, 1
          %s705 = smul.addr %s704, 40
          %s706 = scalar_lea.vmem [#allocation10], %s705
          %708 = dma.done %s703, 640
        $region72: #{tpu_custom_call.1} parent=67 // pred_fallthru
          _
      $region68: #{tpu_custom_call.1} parent=5 // pred_fallthru
        _
    $region6: #{tpu_custom_call.1} parent=1 // loop_footer
      %s28 = sadd.s32 1, %s24
    $region7: #{tpu_custom_call.1} parent=1 // loop_footer_branch
      %23 = sbr.rel target = $region3
    $region8: #{tpu_custom_call.1} parent=1 // loop_exit
      _
    %709 = vsyncpa [#allocation3], 1
    %s710 = scalar_lea.sflag [#allocation3], 1
    %711 = vsyncpa %s710, 1
    %712 = vsyncpa [#allocation6], 1
    %s713 = scalar_lea.sflag [#allocation6], 1
    %714 = vsyncpa %s713, 1
    %715 = vsyncpa [#allocation9], 1
    %s716 = scalar_lea.sflag [#allocation9], 1
    %717 = vsyncpa %s716, 1
    %718 = vsyncpa [#allocation4], 1
    %s719 = scalar_lea.sflag [#allocation4], 1
    %720 = vsyncpa %s719, 1

</llo_original>
